<compile_context>
chip_gen: v7x
topology: tpu7x:2x2x1
jax: 0.10.0
libtpu: 0.0.40
codegen_flags: <defaults>
</compile_context>

<pallas_src>
import functools

import jax
import jax.numpy as jnp
from jax.experimental import pallas as pl
from jax.experimental.pallas import tpu as pltpu


# -----------------------------------------------------------------------------
# Best-effort hardware introspection (safe, conservative fallbacks).
# -----------------------------------------------------------------------------
def _tpu_vmem_capacity_bytes():
    try:
        cap = getattr(pltpu.get_tpu_info(), "vmem_capacity_bytes", None)
        if isinstance(cap, int) and cap >= 16 * 1024 * 1024:
            return cap
    except Exception:
        pass
    try:
        kind = jax.devices()[0].device_kind.lower()
        if ("v4" in kind) or ("v5" in kind) or ("v6" in kind):
            return 128 * 1024 * 1024
    except Exception:
        pass
    return 64 * 1024 * 1024  # conservative (v7x per-TC VMEM)


def _tensorcores_per_chip():
    try:
        kind = jax.devices()[0].device_kind.lower()
        if ("v7" in kind) or ("7x" in kind):
            return 2
    except Exception:
        pass
    return 1


# -----------------------------------------------------------------------------
# Kernels
# -----------------------------------------------------------------------------
def _se_fused_kernel(x_ref, w1t_ref, b1_ref, w2t_ref, b2_ref, o_ref, *, inv_hw):
    # x_ref / o_ref: (bn, C, HW) — HW on lanes, C on sublanes (native NCHW).
    # Squeeze: global average pool = cross-lane (XLU) sum, f32 accumulation.
    pooled = jnp.sum(x_ref[...].astype(jnp.float32), axis=-1) * inv_hw       # (bn, C)

    # Excitation: fc1 (1x1 conv) + ReLU, fc2 (1x1 conv) + sigmoid, batched over
    # the bn rows.  Exact reciprocal (approx=False): the gate is tiny, fully
    # hidden under the slab DMA; approx (~2^-12 rel err) would hurt accuracy.
    h = jnp.dot(pooled, w1t_ref[...],
                preferred_element_type=jnp.float32) + b1_ref[...]            # (bn, Cr)
    h = jnp.maximum(h, 0.0)
    z = jnp.dot(h, w2t_ref[...],
                preferred_element_type=jnp.float32) + b2_ref[...]            # (bn, C)
    s = pl.reciprocal(1.0 + jnp.exp(-z))                                     # (bn, C)

    # Scale: re-read x_ref (keep the big slab's live range short) and
    # broadcast the per-channel gate along the HW lanes.
    o_ref[...] = (x_ref[...] * s[:, :, None]).astype(o_ref.dtype)


def _se_pool_kernel(x_ref, pooled_ref):
    # Pass 1 of the HW-tiled path.  x_ref: (1, C, hw_t); pooled_ref: (1, 1, C)
    # f32 accumulator, resident across the (arbitrary) HW grid axis.
    @pl.when(pl.program_id(1) == 0)
    def _():
        pooled_ref[...] = jnp.zeros_like(pooled_ref)

    pooled_ref[...] += jnp.sum(x_ref[...].astype(jnp.float32), axis=-1)[:, None, :]


def _se_scale_kernel(pooled_ref, w1t_ref, b1_ref, w2t_ref, b2_ref,
                     x_ref, o_ref, *, inv_hw):
    # Pass 2 of the HW-tiled path.  The tiny excitation is recomputed per HW
    # tile — negligible next to the slab's HBM traffic.
    p = pooled_ref[...][:, 0, :] * inv_hw                                    # (1, C)
    h = jnp.dot(p, w1t_ref[...],
                preferred_element_type=jnp.float32) + b1_ref[...]            # (1, Cr)
    h = jnp.maximum(h, 0.0)
    z = jnp.dot(h, w2t_ref[...],
                preferred_element_type=jnp.float32) + b2_ref[...]            # (1, C)
    s = pl.reciprocal(1.0 + jnp.exp(-z))                                     # (1, C)
    o_ref[...] = (x_ref[...] * s[:, :, None]).astype(o_ref.dtype)


# -----------------------------------------------------------------------------
# Wrapper
# -----------------------------------------------------------------------------
def _pick_hw_tile(hw, c, itemsize, data_budget):
    """Largest 128-multiple divisor of hw whose double-buffered in/out blocks fit."""
    best = None
    for t in range(128, hw, 128):
        if hw % t != 0:
            continue
        if 4 * c * t * itemsize <= data_budget:
            best = t
    return best


def se_module(x, w1, b1, w2, b2, *, force_two_pass=False):
    """SE forward.  x: (N, C, H, W) NCHW; w1: (Cr, C); b1: (Cr,); w2: (C, Cr); b2: (C,)."""
    N, C, H, W = x.shape
    Cr = w1.shape[0]
    HW = H * W
    itemsize = jnp.dtype(x.dtype).itemsize

    # NCHW consumed directly: (N, C, HW) is a free, contiguous reshape — no
    # HBM relayout.  HW -> lanes, C -> sublanes.
    x3 = x.reshape(N, C, HW)
    w1t = w1.T                      # (C, Cr)
    w2t = w2.T                      # (Cr, C)
    b1r = b1.reshape(1, Cr)
    b2r = b2.reshape(1, C)

    vmem_cap = _tpu_vmem_capacity_bytes()
    vmem_ceiling = int(vmem_cap * 0.85)              # headroom for Mosaic scratch
    weight_bytes = 2 * (2 * C * Cr + C + Cr) * 4     # double-buffered weights/biases
    data_budget = vmem_ceiling - weight_bytes - (2 << 20)

    slab_bytes = C * HW * itemsize                   # one image's (C, HW) slab
    fused_ok = (not force_two_pass) and (4 * slab_bytes <= data_budget)

    if fused_ok:
        # ---------------- fused single-pass path ----------------------------
        candidates = [d for d in range(1, N + 1)
                      if N % d == 0 and 4 * d * slab_bytes <= data_budget]
        num_tc = _tensorcores_per_chip()
        if num_tc >= 2 and N >= 2:
            even = [d for d in candidates if (N // d) % 2 == 0]
            bn = max(even) if even else max(candidates)
        else:
            bn = max(candidates)                     # 1-TC: grid may be 1
        grid_n = N // bn

        vmem_needed = 4 * bn * slab_bytes + weight_bytes + (2 << 20)
        vmem_limit = int(min(max(vmem_needed, 16 << 20), vmem_ceiling))

        cost = pl.CostEstimate(
            flops=4 * N * C * Cr + 2 * N * C * HW,
            transcendentals=N * C,
            bytes_accessed=2 * N * C * HW * itemsize,
        )

        out3 = pl.pallas_call(
            functools.partial(_se_fused_kernel, inv_hw=1.0 / HW),
            out_shape=jax.ShapeDtypeStruct((N, C, HW), x.dtype),
            grid_spec=pltpu.PrefetchScalarGridSpec(
                num_scalar_prefetch=0,
                grid=(grid_n,),
                in_specs=[
                    pl.BlockSpec((bn, C, HW), lambda n: (n, 0, 0)),  # x sub-batch
                    pl.BlockSpec((C, Cr), lambda n: (0, 0)),         # fc1 weight^T
                    pl.BlockSpec((1, Cr), lambda n: (0, 0)),         # fc1 bias
                    pl.BlockSpec((Cr, C), lambda n: (0, 0)),         # fc2 weight^T
                    pl.BlockSpec((1, C), lambda n: (0, 0)),          # fc2 bias
                ],
                out_specs=pl.BlockSpec((bn, C, HW), lambda n: (n, 0, 0)),
            ),
            compiler_params=pltpu.CompilerParams(
                dimension_semantics=("parallel",),
                vmem_limit_bytes=vmem_limit,
            ),
            cost_estimate=cost,
        )(x3, w1t, b1r, w2t, b2r)
        return out3.reshape(N, C, H, W)

    # ---------------- two-pass HW-tiled path ---------------------------------
    hw_t = _pick_hw_tile(HW, C, itemsize, data_budget)
    if hw_t is None:
        # TODO(synk): masked-tail HW tiling for shapes where HW has no
        # 128-multiple divisor; use plain XLA for these rare shapes instead of
        # requesting less VMEM than the kernel needs.
        return se_module_ref(x, w1, b1, w2, b2)

    grid_hw = HW // hw_t
    block_bytes = C * hw_t * itemsize
    vmem_limit = int(min(max(4 * block_bytes + weight_bytes + (2 << 20), 16 << 20),
                         vmem_ceiling))

    # Pass 1: pool-accumulate into an (N, 1, C) f32 output (resident over HW).
    pooled = pl.pallas_call(
        _se_pool_kernel,
        out_shape=jax.ShapeDtypeStruct((N, 1, C), jnp.float32),
        grid_spec=pltpu.PrefetchScalarGridSpec(
            num_scalar_prefetch=0,
            grid=(N, grid_hw),
            in_specs=[pl.BlockSpec((1, C, hw_t), lambda n, h: (n, 0, h))],
            out_specs=pl.BlockSpec((1, 1, C), lambda n, h: (n, 0, 0)),
        ),
        compiler_params=pltpu.CompilerParams(
            dimension_semantics=("parallel", "arbitrary"),
            vmem_limit_bytes=vmem_limit,
        ),
    )(x3)

    # Pass 2: excitation + scale, tiled over HW.
    out3 = pl.pallas_call(
        functools.partial(_se_scale_kernel, inv_hw=1.0 / HW),
        out_shape=jax.ShapeDtypeStruct((N, C, HW), x.dtype),
        grid_spec=pltpu.PrefetchScalarGridSpec(
            num_scalar_prefetch=0,
            grid=(N, grid_hw),
            in_specs=[
                pl.BlockSpec((1, 1, C), lambda n, h: (n, 0, 0)),     # pooled
                pl.BlockSpec((C, Cr), lambda n, h: (0, 0)),          # fc1 weight^T
                pl.BlockSpec((1, Cr), lambda n, h: (0, 0)),          # fc1 bias
                pl.BlockSpec((Cr, C), lambda n, h: (0, 0)),          # fc2 weight^T
                pl.BlockSpec((1, C), lambda n, h: (0, 0)),           # fc2 bias
                pl.BlockSpec((1, C, hw_t), lambda n, h: (n, 0, h)),  # x tile
            ],
            out_specs=pl.BlockSpec((1, C, hw_t), lambda n, h: (n, 0, h)),
        ),
        compiler_params=pltpu.CompilerParams(
            dimension_semantics=("parallel", "parallel"),
            vmem_limit_bytes=vmem_limit,
        ),
        cost_estimate=pl.CostEstimate(
            flops=4 * N * C * Cr * grid_hw + 2 * N * C * HW,
            transcendentals=N * C * grid_hw,
            bytes_accessed=2 * N * C * HW * itemsize,
        ),
    )(pooled, w1t, b1r, w2t, b2r, x3)
    return out3.reshape(N, C, H, W)


def se_module_ref(x, w1, b1, w2, b2):
    """Pure-JAX reference matching PyTorch SEModule.forward."""
    pooled = jnp.mean(x, axis=(2, 3), keepdims=True)                 # (N,C,1,1)
    h = jnp.einsum("oc,ncij->noij", w1, pooled) + b1[None, :, None, None]
    h = jnp.maximum(h, 0.0)
    s = jnp.einsum("oc,ncij->noij", w2, h) + b2[None, :, None, None]
    s = jax.nn.sigmoid(s)
    return x * s


if __name__ == "__main__":
    key = jax.random.PRNGKey(0)
    N, C, H, W = 2, 4, 16, 16
    reduction = 2
    Cr = C // reduction

    kx, kw1, kb1, kw2, kb2 = jax.random.split(key, 5)
    x = jax.random.normal(kx, (N, C, H, W), dtype=jnp.float32)
    # Deterministic parameter init (synthetic; shapes match nn.Conv2d 1x1).
    w1 = 0.1 * jax.random.normal(kw1, (Cr, C), dtype=jnp.float32)
    b1 = 0.1 * jax.random.normal(kb1, (Cr,), dtype=jnp.float32)
    w2 = 0.1 * jax.random.normal(kw2, (C, Cr), dtype=jnp.float32)
    b2 = 0.1 * jax.random.normal(kb2, (C,), dtype=jnp.float32)

    ref = se_module_ref(x, w1, b1, w2, b2)

    # Fused single-pass path (default for shapes whose slabs fit VMEM).
    out = jax.block_until_ready(se_module(x, w1, b1, w2, b2))
    assert out.shape == (N, C, H, W)
    assert jnp.allclose(out, ref, atol=1e-5, rtol=1e-5), "fused path mismatch"

    # Also exercise the two-pass HW-tiled fallback (HW=256 -> hw_t=128).
    out2 = jax.block_until_ready(se_module(x, w1, b1, w2, b2, force_two_pass=True))
    assert jnp.allclose(out2, ref, atol=1e-5, rtol=1e-5), "two-pass path mismatch"

    print("KERNEL_OK")
</pallas_src>

<mosaic_0001>
module attributes {stable_mosaic.version = 11 : i64} {
  func.func @_se_fused_kernel(%arg0: i32, %arg1: memref<2x4x256xf32, #tpu.memory_space<vmem>>, %arg2: memref<4x2xf32, #tpu.memory_space<vmem>>, %arg3: memref<1x2xf32, #tpu.memory_space<vmem>>, %arg4: memref<2x4xf32, #tpu.memory_space<vmem>>, %arg5: memref<1x4xf32, #tpu.memory_space<vmem>>, %arg6: memref<2x4x256xf32, #tpu.memory_space<vmem>>) attributes {dimension_semantics = [#tpu.dimension_semantics<parallel>], iteration_bounds = array<i64: 1>, scalar_prefetch = 0 : i64, scratch_operands = 0 : i64, tpu.core_type = #tpu.core_type<tc>, window_params = [{transform_indices = @transform_0, window_bounds = array<i64: 2, 4, 256>}, {pipeline_mode = #tpu.pipeline_mode<synchronous>, transform_indices = @transform_1, window_bounds = array<i64: 4, 2>}, {pipeline_mode = #tpu.pipeline_mode<synchronous>, transform_indices = @transform_2, window_bounds = array<i64: 1, 2>}, {pipeline_mode = #tpu.pipeline_mode<synchronous>, transform_indices = @transform_3, window_bounds = array<i64: 2, 4>}, {pipeline_mode = #tpu.pipeline_mode<synchronous>, transform_indices = @transform_4, window_bounds = array<i64: 1, 4>}, {transform_indices = @transform_5, window_bounds = array<i64: 2, 4, 256>}]} {
    %c0 = arith.constant 0 : index
    %c0_0 = arith.constant 0 : index
    %c0_1 = arith.constant 0 : index
    %0 = vector.load %arg1[%c0, %c0_0, %c0_1] : memref<2x4x256xf32, #tpu.memory_space<vmem>>, vector<2x4x256xf32>
    %cst = arith.constant dense<0.000000e+00> : vector<2x4xf32>
    %1 = vector.multi_reduction <add>, %0, %cst [2] : vector<2x4x256xf32> to vector<2x4xf32>
    %cst_2 = arith.constant 3.906250e-03 : f32
    %2 = vector.broadcast %cst_2 : f32 to vector<2x4xf32>
    %3 = arith.mulf %1, %2 : vector<2x4xf32>
    %c0_3 = arith.constant 0 : index
    %c0_4 = arith.constant 0 : index
    %4 = vector.load %arg2[%c0_3, %c0_4] : memref<4x2xf32, #tpu.memory_space<vmem>>, vector<4x2xf32>
    %cst_5 = arith.constant dense<0.000000e+00> : vector<2x2xf32>
    %5 = tpu.matmul %3, %4, %cst_5 {dimension_numbers = #tpu.dot_dimension_numbers<[1], [0], [0], [1], [0, 0, 1, 1], [], []>} : vector<2x4xf32>, vector<4x2xf32>, vector<2x2xf32> -> vector<2x2xf32>
    %c0_6 = arith.constant 0 : index
    %c0_7 = arith.constant 0 : index
    %6 = vector.load %arg3[%c0_6, %c0_7] : memref<1x2xf32, #tpu.memory_space<vmem>>, vector<1x2xf32>
    %7 = vector.broadcast %6 : vector<1x2xf32> to vector<2x2xf32>
    %8 = arith.addf %5, %7 : vector<2x2xf32>
    %cst_8 = arith.constant 0.000000e+00 : f32
    %9 = vector.broadcast %cst_8 : f32 to vector<2x2xf32>
    %10 = arith.maximumf %8, %9 : vector<2x2xf32>
    %c0_9 = arith.constant 0 : index
    %c0_10 = arith.constant 0 : index
    %11 = vector.load %arg4[%c0_9, %c0_10] : memref<2x4xf32, #tpu.memory_space<vmem>>, vector<2x4xf32>
    %cst_11 = arith.constant dense<0.000000e+00> : vector<2x4xf32>
    %12 = tpu.matmul %10, %11, %cst_11 {dimension_numbers = #tpu.dot_dimension_numbers<[1], [0], [0], [1], [0, 0, 1, 1], [], []>} : vector<2x2xf32>, vector<2x4xf32>, vector<2x4xf32> -> vector<2x4xf32>
    %c0_12 = arith.constant 0 : index
    %c0_13 = arith.constant 0 : index
    %13 = vector.load %arg5[%c0_12, %c0_13] : memref<1x4xf32, #tpu.memory_space<vmem>>, vector<1x4xf32>
    %14 = vector.broadcast %13 : vector<1x4xf32> to vector<2x4xf32>
    %15 = arith.addf %12, %14 : vector<2x4xf32>
    %cst_14 = arith.constant 0.000000e+00 : f32
    %16 = vector.broadcast %cst_14 : f32 to vector<2x4xf32>
    %17 = arith.subf %16, %15 : vector<2x4xf32>
    %18 = math.exp %17 : vector<2x4xf32>
    %cst_15 = arith.constant 1.000000e+00 : f32
    %19 = vector.broadcast %cst_15 : f32 to vector<2x4xf32>
    %20 = arith.addf %19, %18 : vector<2x4xf32>
    %21 = tpu.reciprocal %20 : vector<2x4xf32> -> vector<2x4xf32>
    %c0_16 = arith.constant 0 : index
    %c0_17 = arith.constant 0 : index
    %c0_18 = arith.constant 0 : index
    %22 = vector.load %arg1[%c0_16, %c0_17, %c0_18] : memref<2x4x256xf32, #tpu.memory_space<vmem>>, vector<2x4x256xf32>
    %23 = vector.shape_cast %21 : vector<2x4xf32> to vector<2x4x1xf32>
    %24 = vector.broadcast %23 : vector<2x4x1xf32> to vector<2x4x256xf32>
    %25 = arith.mulf %22, %24 : vector<2x4x256xf32>
    %c0_19 = arith.constant 0 : index
    %c0_20 = arith.constant 0 : index
    %c0_21 = arith.constant 0 : index
    %26 = vector.load %arg6[%c0_19, %c0_20, %c0_21] : memref<2x4x256xf32, #tpu.memory_space<vmem>>, vector<2x4x256xf32>
    tpu.vector_store %arg6[%c0_19, %c0_20, %c0_21], %25 {strides = array<i32>} : memref<2x4x256xf32, #tpu.memory_space<vmem>>, vector<2x4x256xf32>,
    return
  }
  func.func @transform_0(%arg0: i32) -> (i32, i32, i32) {
    %c0_i32 = arith.constant 0 : i32
    %c0_i32_0 = arith.constant 0 : i32
    %c0_i32_1 = arith.constant 0 : i32
    return %arg0, %c0_i32, %c0_i32_0 : i32, i32, i32
  }
  func.func @transform_1(%arg0: i32) -> (i32, i32) {
    %c0_i32 = arith.constant 0 : i32
    %c0_i32_0 = arith.constant 0 : i32
    %c0_i32_1 = arith.constant 0 : i32
    return %c0_i32, %c0_i32_0 : i32, i32
  }
  func.func @transform_2(%arg0: i32) -> (i32, i32) {
    %c0_i32 = arith.constant 0 : i32
    %c0_i32_0 = arith.constant 0 : i32
    %c0_i32_1 = arith.constant 0 : i32
    return %c0_i32, %c0_i32_0 : i32, i32
  }
  func.func @transform_3(%arg0: i32) -> (i32, i32) {
    %c0_i32 = arith.constant 0 : i32
    %c0_i32_0 = arith.constant 0 : i32
    %c0_i32_1 = arith.constant 0 : i32
    return %c0_i32, %c0_i32_0 : i32, i32
  }
  func.func @transform_4(%arg0: i32) -> (i32, i32) {
    %c0_i32 = arith.constant 0 : i32
    %c0_i32_0 = arith.constant 0 : i32
    %c0_i32_1 = arith.constant 0 : i32
    return %c0_i32, %c0_i32_0 : i32, i32
  }
  func.func @transform_5(%arg0: i32) -> (i32, i32, i32) {
    %c0_i32 = arith.constant 0 : i32
    %c0_i32_0 = arith.constant 0 : i32
    %c0_i32_1 = arith.constant 0 : i32
    return %arg0, %c0_i32, %c0_i32_0 : i32, i32, i32
  }
}

</mosaic_0001>

<llo_original>
// kernel: tpu_custom_call.1
$region0: #{tpu_custom_call.1}
  #allocation0 [shape = 'u32[]', space=smem, size = 0x4, offset = 0x4, fixed_abs, tag = 'smem constant byte address 0x4 - core index']
  #allocation1 [shape = 'u32[144,128]{1,0:T(1,128)}', space=vmem, size = 0x12000, scoped, tag = 'internal scratch']
  %s0 = inlined_call_operand.hbm [shape: f32[2,4,256], index: 0, kind: input, shape index: {}]
  %s1 = inlined_call_operand.vmem [shape: f32[4,2], index: 1, kind: input, shape index: {}]
  %s2 = inlined_call_operand.vmem [shape: f32[1,2], index: 2, kind: input, shape index: {}]
  %s3 = inlined_call_operand.vmem [shape: f32[2,4], index: 3, kind: input, shape index: {}]
  %s4 = inlined_call_operand.vmem [shape: f32[1,4], index: 4, kind: input, shape index: {}]
  %s5 = inlined_call_operand.hbm [shape: f32[2,4,256], index: 5, kind: output, shape index: {}]
  %s6 = sld [smem:[#allocation0]]
  $region34: #{tpu_custom_call.1} parent=0
    _
  %s8 = ssub.s32 1, %s6
  %s9 = scalar_select 0, %s8, %s6
  $region1: #{tpu_custom_call.1} parent=0
    #allocation2 [shape = 'u8[8192]{0}', space=vmem, size = 0x2000, scoped, tag = 'input window, operand 0, single buffered']
    #allocation3 [shape = 's32[1]{0}', space=sflag, size = 0x4, scoped, tag = 'scoped memory for tpu_custom_call.1']
    #allocation4 [shape = 's32[1]{0}', space=sflag, size = 0x4, scoped, tag = 'scoped memory for tpu_custom_call.1']
    #allocation5 [shape = 'u8[8192]{0}', space=vmem, size = 0x2000, scoped, tag = 'output window, operand 0, single buffered']
    %10 = vsyncpa [#allocation3], 0
    %11 = vsyncpa [#allocation4], 0
    // Predicated region
    $region2: #{tpu_custom_call.1} parent=1 // pred_check
      _
    $region3: #{tpu_custom_call.1} parent=1 // pred_check_branch
      %13 = sbr.rel (0) target = $region5
    $region4: #{tpu_custom_call.1} parent=1 // pred_region
      %s15 = ssub.s32 256, 256
      %16 = vsyncadd [#allocation3], %s15
      %s17 = sshll.u32 [#allocation2], 4
      %s18 = int_to_ptr.vmem [resolvable:$true] %s17
      %23 = dma.hbm_to_vmem [thread:$0]  %s0, 256, %s18, [#allocation3], 128, 128, 8
    $region5: #{tpu_custom_call.1} parent=1 // pred_fallthru
      _
    // Predicated region
    $region6: #{tpu_custom_call.1} parent=1 // pred_check
      _
    $region7: #{tpu_custom_call.1} parent=1 // pred_check_branch
      %25 = sbr.rel (0) target = $region9
    $region8: #{tpu_custom_call.1} parent=1 // pred_region
      _
    $region9: #{tpu_custom_call.1} parent=1 // pred_fallthru
      _
    // Predicated region
    $region10: #{tpu_custom_call.1} parent=1 // pred_check
      _
    $region11: #{tpu_custom_call.1} parent=1 // pred_check_branch
      %27 = sbr.rel (0) target = $region13
    $region12: #{tpu_custom_call.1} parent=1 // pred_region
      _
    $region13: #{tpu_custom_call.1} parent=1 // pred_fallthru
      _
    // Predicated region
    $region14: #{tpu_custom_call.1} parent=1 // pred_check
      _
    $region15: #{tpu_custom_call.1} parent=1 // pred_check_branch
      %29 = sbr.rel (0) target = $region17
    $region16: #{tpu_custom_call.1} parent=1 // pred_region
      _
    $region17: #{tpu_custom_call.1} parent=1 // pred_fallthru
      _
    // Predicated region
    $region18: #{tpu_custom_call.1} parent=1 // pred_check
      _
    $region19: #{tpu_custom_call.1} parent=1 // pred_check_branch
      %31 = sbr.rel (0) target = $region21
    $region20: #{tpu_custom_call.1} parent=1 // pred_region
      _
    $region21: #{tpu_custom_call.1} parent=1 // pred_fallthru
      _
    // Predicated region
    $region22: #{tpu_custom_call.1} parent=1 // pred_check
      _
    $region23: #{tpu_custom_call.1} parent=1 // pred_check_branch
      %33 = sbr.rel (0) target = $region25
    $region24: #{tpu_custom_call.1} parent=1 // pred_region
      %34 = dma.done [#allocation3], 256
    $region25: #{tpu_custom_call.1} parent=1 // pred_fallthru
      _
    %v35 = vld [vmem:[#allocation2] sm:$0xff]
    %v36 = vld [vmem:[#allocation2 + $0x8] sm:$0xff]
    %v39 = vcombine.high %v35, %v35
    %v40 = vcombine.high %v36, %v36
    %vm43 = vcmask 1043456
    %v44 = vsel %vm43, %v35, 0.0
    %v45 = vsel %vm43, %v39, 0.0
    %v46 = vadd.f32 %v44, %v45
    %47 = vadd.xlane.f32.xlu0 %v46
    %v48 = vpop.xlane.xlu0 %47
    %v49 = vsel %vm43, %v36, 0.0
    %v50 = vsel %vm43, %v40, 0.0
    %v51 = vadd.f32 %v49, %v50
    %52 = vadd.xlane.f32.xlu0 %v51
    %v53 = vpop.xlane.xlu0 %52
    %v54 = vmul.f32 %v48, 0.00390625
    %v55 = vmul.f32 %v53, 0.00390625
    %v56 = vld [vmem:[%s1] sm:$0xf]
    %v57 = vld [vmem:[%s2] sm:$0x1]
    %v59 = vlaneseq
    %v60 = vshrl.u32 %v59, 7
    %v61 = vsub.s32 0, %v60
    %v62 = vrot.slane %v57, %v61
    %v66 = vlaneseq
    %v67 = vand.u32 %v66, 127
    %v68 = vlaneseq
    %v69 = vshrl.u32 %v68, 7
    %v70 = vsub.s32 %v67, %v69
    %v71 = vrot.slane %v54, %v70
    %v72 = vlaneseq
    %v73 = vshrl.u32 %v72, 7
    %v74 = vsub.s32 %v67, %v73
    %v75 = vrot.slane %v55, %v74
    %vm76 = vcmask 1041409
    %v77 = vsel %vm76, %v75, %v71
    %vm78 = vcmask 31744
    %v79 = vsel %vm78, %v77, 0
    %v82 = vsel %vm43, %v56, 0
    %84 = vmatprep.subr.mxu0 0.0
    %85 = vmatpush1.msra.mxu0 %v82
    %86 = vmatprep.subr.mxu0 0.0
    %87 = vmatpush1.msra.mxu0 0.0
    %88 = vmatprep.subr.mxu0 0.0
    %89 = vmatpush1.msra.mxu0 0.0
    %90 = vmatprep.subr.mxu0 0.0
    %91 = vmatpush1.msra.mxu0 0.0
    %92 = vmatprep.subr.mxu0 0.0
    %93 = vmatpush1.msra.mxu0 0.0
    %94 = vmatprep.subr.mxu0 0.0
    %95 = vmatpush1.msra.mxu0 0.0
    %96 = vmatprep.subr.mxu0 0.0
    %97 = vmatpush1.msra.mxu0 0.0
    %98 = vmatprep.subr.mxu0 0.0
    %99 = vmatpush1.msra.mxu0 0.0
    %100 = vmatprep.subr.mxu0 0.0
    %101 = vmatpush1.msra.mxu0 0.0
    %102 = vmatprep.subr.mxu0 0.0
    %103 = vmatpush1.msra.mxu0 0.0
    %104 = vmatprep.subr.mxu0 0.0
    %105 = vmatpush1.msra.mxu0 0.0
    %106 = vmatprep.subr.mxu0 0.0
    %107 = vmatpush1.msra.mxu0 0.0
    %108 = vmatprep.subr.mxu0 0.0
    %109 = vmatpush1.msra.mxu0 0.0
    %110 = vmatprep.subr.mxu0 0.0
    %111 = vmatpush1.msra.mxu0 0.0
    %112 = vmatprep.subr.mxu0 0.0
    %113 = vmatpush1.msra.mxu0 0.0
    %114 = vmatprep.subr.mxu0 0.0
    %115 = vmatpush1.msra.mxu0 0.0
    %116 = vmatprep.subr.mxu0 0.0
    %117 = vmatpush1.msra.mxu0 0.0
    %118 = vmatprep.subr.mxu0 0.0
    %119 = vmatpush1.msra.mxu0 0.0
    %120 = vmatprep.subr.mxu0 0.0
    %121 = vmatpush1.msra.mxu0 0.0
    %122 = vmatprep.subr.mxu0 0.0
    %123 = vmatpush1.msra.mxu0 0.0
    %124 = vmatprep.subr.mxu0 0.0
    %125 = vmatpush1.msra.mxu0 0.0
    %126 = vmatprep.subr.mxu0 0.0
    %127 = vmatpush1.msra.mxu0 0.0
    %128 = vmatprep.subr.mxu0 0.0
    %129 = vmatpush1.msra.mxu0 0.0
    %130 = vmatprep.subr.mxu0 0.0
    %131 = vmatpush1.msra.mxu0 0.0
    %132 = vmatprep.subr.mxu0 0.0
    %133 = vmatpush1.msra.mxu0 0.0
    %134 = vmatprep.subr.mxu0 0.0
    %135 = vmatpush1.msra.mxu0 0.0
    %136 = vmatprep.subr.mxu0 0.0
    %137 = vmatpush1.msra.mxu0 0.0
    %138 = vmatprep.subr.mxu0 0.0
    %139 = vmatpush1.msra.mxu0 0.0
    %140 = vmatprep.subr.mxu0 0.0
    %141 = vmatpush1.msra.mxu0 0.0
    %142 = vmatprep.subr.mxu0 0.0
    %143 = vmatpush1.msra.mxu0 0.0
    %144 = vmatprep.subr.mxu0 0.0
    %145 = vmatpush1.msra.mxu0 0.0
    %146 = vmatprep.subr.mxu0 0.0
    %147 = vmatpush1.msra.mxu0 0.0
    %148 = vmatprep.mubr.f32.mxu0 0.0
    %149 = vmatmul.mubr.f32.gmra.mrb[0].mxu0 %v79
    %v150 = vpop.f32.mrb[0].mxu0
    %v151 = vadd.f32 %v62, %v150
    %v152 = vpop.f32.mrb[0].mxu0
    %153 = vdwg.mxu0
    %v154 = vmax.f32 %v151, 0.0
    %v155 = vld [vmem:[%s3] sm:$0x3]
    %v156 = vld [vmem:[%s4] sm:$0x1]
    %v158 = vlaneseq
    %v159 = vshrl.u32 %v158, 7
    %v160 = vsub.s32 0, %v159
    %v161 = vrot.slane %v156, %v160
    %vm163 = vcmask 15360
    %v165 = vsel %vm163, %v154, 0
    %vm167 = vcmask 1041408
    %v169 = vsel %vm167, %v155, 0
    %171 = vmatprep.subr.mxu0 0.0
    %172 = vmatpush1.msra.mxu0 %v169
    %173 = vmatprep.subr.mxu0 0.0
    %174 = vmatpush1.msra.mxu0 0.0
    %175 = vmatprep.subr.mxu0 0.0
    %176 = vmatpush1.msra.mxu0 0.0
    %177 = vmatprep.subr.mxu0 0.0
    %178 = vmatpush1.msra.mxu0 0.0
    %179 = vmatprep.subr.mxu0 0.0
    %180 = vmatpush1.msra.mxu0 0.0
    %181 = vmatprep.subr.mxu0 0.0
    %182 = vmatpush1.msra.mxu0 0.0
    %183 = vmatprep.subr.mxu0 0.0
    %184 = vmatpush1.msra.mxu0 0.0
    %185 = vmatprep.subr.mxu0 0.0
    %186 = vmatpush1.msra.mxu0 0.0
    %187 = vmatprep.subr.mxu0 0.0
    %188 = vmatpush1.msra.mxu0 0.0
    %189 = vmatprep.subr.mxu0 0.0
    %190 = vmatpush1.msra.mxu0 0.0
    %191 = vmatprep.subr.mxu0 0.0
    %192 = vmatpush1.msra.mxu0 0.0
    %193 = vmatprep.subr.mxu0 0.0
    %194 = vmatpush1.msra.mxu0 0.0
    %195 = vmatprep.subr.mxu0 0.0
    %196 = vmatpush1.msra.mxu0 0.0
    %197 = vmatprep.subr.mxu0 0.0
    %198 = vmatpush1.msra.mxu0 0.0
    %199 = vmatprep.subr.mxu0 0.0
    %200 = vmatpush1.msra.mxu0 0.0
    %201 = vmatprep.subr.mxu0 0.0
    %202 = vmatpush1.msra.mxu0 0.0
    %203 = vmatprep.subr.mxu0 0.0
    %204 = vmatpush1.msra.mxu0 0.0
    %205 = vmatprep.subr.mxu0 0.0
    %206 = vmatpush1.msra.mxu0 0.0
    %207 = vmatprep.subr.mxu0 0.0
    %208 = vmatpush1.msra.mxu0 0.0
    %209 = vmatprep.subr.mxu0 0.0
    %210 = vmatpush1.msra.mxu0 0.0
    %211 = vmatprep.subr.mxu0 0.0
    %212 = vmatpush1.msra.mxu0 0.0
    %213 = vmatprep.subr.mxu0 0.0
    %214 = vmatpush1.msra.mxu0 0.0
    %215 = vmatprep.subr.mxu0 0.0
    %216 = vmatpush1.msra.mxu0 0.0
    %217 = vmatprep.subr.mxu0 0.0
    %218 = vmatpush1.msra.mxu0 0.0
    %219 = vmatprep.subr.mxu0 0.0
    %220 = vmatpush1.msra.mxu0 0.0
    %221 = vmatprep.subr.mxu0 0.0
    %222 = vmatpush1.msra.mxu0 0.0
    %223 = vmatprep.subr.mxu0 0.0
    %224 = vmatpush1.msra.mxu0 0.0
    %225 = vmatprep.subr.mxu0 0.0
    %226 = vmatpush1.msra.mxu0 0.0
    %227 = vmatprep.subr.mxu0 0.0
    %228 = vmatpush1.msra.mxu0 0.0
    %229 = vmatprep.subr.mxu0 0.0
    %230 = vmatpush1.msra.mxu0 0.0
    %231 = vmatprep.subr.mxu0 0.0
    %232 = vmatpush1.msra.mxu0 0.0
    %233 = vmatprep.subr.mxu0 0.0
    %234 = vmatpush1.msra.mxu0 0.0
    %235 = vmatprep.mubr.f32.mxu0 0.0
    %236 = vmatmul.mubr.f32.gmra.mrb[0].mxu0 %v165
    %v237 = vpop.f32.mrb[0].mxu0
    %v238 = vadd.f32 %v161, %v237
    %v239 = vpop.f32.mrb[0].mxu0
    %240 = vdwg.mxu0
    %v241 = vsub.f32 0.0, %v238
    %v242 = vmul.f32 %v241, 1.442695
    %v243 = vpow.pop %v242
    %v244 = vadd.f32 %v243, 1.0
    %v245 = vrcp.pop %v244
    %v246 = vlaneseq
    %v247 = vshrl.u32 %v246, 7
    %v248 = vsub.s32 0, %v247
    %v249 = vrot.slane %v245, %v248
    %251 = vbcast.lane.b32.xlu0 %v249, 256
    %v252 = vpop.permute.xlu0 %251
    %v253 = vlaneseq
    %v254 = vshrl.u32 %v253, 7
    %v255 = vsub.s32 1, %v254
    %v256 = vrot.slane %v245, %v255
    %258 = vbcast.lane.b32.xlu0 %v256, 256
    %v259 = vpop.permute.xlu0 %258
    %v263 = vunpack.c.l.s4 839922192
    %v264 = vunpack.c.0.s8 %v263
    %v265 = vlaneseq
    %v266 = vshrl.u32 %v265, 7
    %v267 = vsub.s32 %v264, %v266
    %v268 = vrot.slane %v252, %v267
    %v270 = vunpack.c.l.s4 839922192
    %v271 = vunpack.c.0.s8 %v270
    %v272 = vlaneseq
    %v273 = vshrl.u32 %v272, 7
    %v274 = vsub.s32 %v271, %v273
    %v275 = vrot.slane %v259, %v274
    %v278 = vmul.f32 %v35, %v268
    %v279 = vmul.f32 %v36, %v275
    %280 = vst [vmem:[#allocation5] sm:$0xff] %v278
    %281 = vst [vmem:[#allocation5 + $0x8] sm:$0xff] %v279
    // Predicated region
    $region26: #{tpu_custom_call.1} parent=1 // pred_check
      _
    $region27: #{tpu_custom_call.1} parent=1 // pred_check_branch
      %283 = sbr.rel (0) target = $region29
    $region28: #{tpu_custom_call.1} parent=1 // pred_region
      %s285 = ssub.s32 256, 256
      %286 = vsyncadd [#allocation4], %s285
      %s287 = sshll.u32 [#allocation5], 4
      %s288 = int_to_ptr.vmem [resolvable:$true] %s287
      %293 = dma.vmem_to_hbm [thread:$0]  %s288, 256, %s5, [#allocation4], 128, 128, 8
    $region29: #{tpu_custom_call.1} parent=1 // pred_fallthru
      _
    // Predicated region
    $region30: #{tpu_custom_call.1} parent=1 // pred_check
      _
    $region31: #{tpu_custom_call.1} parent=1 // pred_check_branch
      %295 = sbr.rel (0) target = $region33
    $region32: #{tpu_custom_call.1} parent=1 // pred_region
      %296 = dma.done [#allocation4], 256
    $region33: #{tpu_custom_call.1} parent=1 // pred_fallthru
      _
    %297 = vsyncpa [#allocation3], 1
    %298 = vsyncpa [#allocation4], 1

</llo_original>
